<compile_context>
chip_gen: v5e
topology: v5e:2x2
jax: 0.10.0
libtpu: 0.0.40
codegen_flags: <defaults>
</compile_context>

<pallas_src>
import math

import jax
import jax.numpy as jnp
from jax.experimental import pallas as pl
from jax.experimental.pallas import tpu as pltpu


def _final_layer_kernel(x_ref, lnw_ref, w_ref, b_ref, o_ref, h_ref):
    """One (row-tile, out-channel-tile) grid step.

    x_ref  : (TM, D)   input activation rows
    lnw_ref: (1, D)    LayerNorm weight
    w_ref  : (D, TN)   projection weight tile ((in, out) layout)
    b_ref  : (1, TN)   projection bias tile
    o_ref  : (TM, TN)  output tile
    h_ref  : (TM, D)   VMEM scratch with LayerNorm-ed rows (compute dtype)
    """
    n = pl.program_id(1)

    # LayerNorm once per row tile; reused across all output-channel tiles.
    @pl.when(n == 0)
    def _():
        x = x_ref[...].astype(jnp.float32)                     # f32 statistics
        mu = jnp.mean(x, axis=-1, keepdims=True)
        xc = x - mu
        var = jnp.mean(xc * xc, axis=-1, keepdims=True)
        h = xc * jax.lax.rsqrt(var + 1e-5) * lnw_ref[...].astype(jnp.float32)
        h_ref[...] = h.astype(h_ref.dtype)

    # Projection: MXU operands in compute dtype, f32 accumulation.
    acc = jnp.dot(h_ref[...], w_ref[...], preferred_element_type=jnp.float32)
    o_ref[...] = (acc + b_ref[...].astype(jnp.float32)).astype(o_ref.dtype)


def _pick_tile(dim, target, quantum):
    """Largest multiple of `quantum` that divides `dim` and is <= target
    (falls back to the full dim, which is always legal for BlockSpec)."""
    if dim <= target:
        return dim
    t = (target // quantum) * quantum
    while t >= quantum:
        if dim % t == 0:
            return t
        t -= quantum
    return dim


def transformer_final_layer(x, ln_w, w, b, *, tm_target=256, tn_target=512):
    """x: (B, S, D); ln_w: (D,); w: (out_channels, D) [PyTorch layout]; b: (out_channels,)."""
    B, S, D = x.shape
    N = w.shape[0]
    M = B * S

    x2 = jnp.asarray(x).reshape(M, D)           # free contiguous reshape
    w_t = jnp.asarray(w).T                      # (D, N) for row-major matmul
    compute_dtype = w_t.dtype                   # bf16 weights => bf16 MXU operands
    ln_w2 = jnp.asarray(ln_w).reshape(1, D)
    b2 = jnp.asarray(b).reshape(1, N)

    TM = _pick_tile(M, tm_target, 8)            # sublane quantum
    TN = _pick_tile(N, tn_target, 128)          # lane quantum (lane-dense output)
    grid = (M // TM, N // TN)

    # Explicit VMEM budget: 2x each pipelined operand (double buffering) + scratch.
    def _nbytes(shape, dt):
        return math.prod(shape) * jnp.dtype(dt).itemsize
    est = 2 * (_nbytes((TM, D), x2.dtype) + _nbytes((1, D), ln_w2.dtype)
               + _nbytes((D, TN), compute_dtype) + _nbytes((1, TN), b2.dtype)
               + _nbytes((TM, TN), x2.dtype)) + _nbytes((TM, D), compute_dtype)
    vmem_limit = int(min(max(2 * est, 4 * 1024 * 1024), 64 * 1024 * 1024))

    out2 = pl.pallas_call(
        _final_layer_kernel,
        out_shape=jax.ShapeDtypeStruct((M, N), x.dtype),
        grid_spec=pltpu.PrefetchScalarGridSpec(
            num_scalar_prefetch=0,
            grid=grid,
            in_specs=[
                pl.BlockSpec((TM, D), lambda mi, ni: (mi, 0)),   # activation rows
                pl.BlockSpec((1, D),  lambda mi, ni: (0, 0)),    # LN weight
                pl.BlockSpec((D, TN), lambda mi, ni: (0, ni)),   # W^T tile
                pl.BlockSpec((1, TN), lambda mi, ni: (0, ni)),   # bias tile
            ],
            out_specs=pl.BlockSpec((TM, TN), lambda mi, ni: (mi, ni)),
            scratch_shapes=[pltpu.VMEM((TM, D), compute_dtype)],
        ),
        compiler_params=pltpu.CompilerParams(
            dimension_semantics=("parallel", "arbitrary"),
            vmem_limit_bytes=vmem_limit,
        ),
    )(x2, ln_w2, w_t, b2)

    return out2.reshape(B, S, N)


def _reference(x, ln_w, w, b):
    """Pure-JAX reference mirroring the PyTorch forward (f32)."""
    x32 = x.astype(jnp.float32)
    mu = jnp.mean(x32, axis=-1, keepdims=True)
    var = jnp.mean((x32 - mu) ** 2, axis=-1, keepdims=True)
    h = (x32 - mu) * jax.lax.rsqrt(var + 1e-5) * ln_w.astype(jnp.float32)
    return h @ w.astype(jnp.float32).T + b.astype(jnp.float32)


if __name__ == "__main__":
    # Small shapes consistent with the module: (batch, seq, hidden) -> out_channels.
    B, S, D, N = 2, 16, 32, 128

    key = jax.random.PRNGKey(0)
    k0, k1, k2, k3 = jax.random.split(key, 4)

    x = jax.random.normal(k0, (B, S, D), jnp.float32)
    ln_w = 1.0 + 0.1 * jax.random.normal(k1, (D,), jnp.float32)       # LayerNorm weight
    w = 0.1 * jax.random.normal(k2, (N, D), jnp.float32)              # Linear weight (out, in)
    b = 0.01 * jax.random.normal(k3, (N,), jnp.float32)               # Linear bias

    # f32 path vs reference.
    out = transformer_final_layer(x, ln_w, w, b)
    jax.block_until_ready(out)
    ref = _reference(x, ln_w, w, b)
    assert out.shape == (B, S, N)
    assert jnp.allclose(out, ref, rtol=1e-4, atol=1e-4), "mismatch vs reference (f32)"

    # Module's zero-initialized linear => forward returns zeros.
    out0 = transformer_final_layer(x, ln_w, jnp.zeros_like(w), jnp.zeros_like(b))
    jax.block_until_ready(out0)
    assert jnp.allclose(out0, 0.0), "zero-init linear should produce zeros"

    # bf16 MXU-operand path (f32 accumulation) — matches f32 reference loosely.
    out_bf16 = transformer_final_layer(x, ln_w, w.astype(jnp.bfloat16), b)
    jax.block_until_ready(out_bf16)
    assert jnp.allclose(out_bf16.astype(jnp.float32), ref, rtol=5e-2, atol=5e-2), \
        "mismatch vs reference (bf16 operands)"

    print("KERNEL_OK")
</pallas_src>

<mosaic_0001>
module attributes {stable_mosaic.version = 11 : i64} {
  func.func @_final_layer_kernel(%arg0: i32, %arg1: i32, %arg2: memref<32x32xf32, #tpu.memory_space<vmem>>, %arg3: memref<1x32xf32, #tpu.memory_space<vmem>>, %arg4: memref<32x128xf32, #tpu.memory_space<vmem>>, %arg5: memref<1x128xf32, #tpu.memory_space<vmem>>, %arg6: memref<32x128xf32, #tpu.memory_space<vmem>>, %arg7: memref<32x32xf32, #tpu.memory_space<vmem>>) attributes {dimension_semantics = [#tpu.dimension_semantics<parallel>, #tpu.dimension_semantics<arbitrary>], iteration_bounds = array<i64: 1, 1>, scalar_prefetch = 0 : i64, scratch_operands = 1 : i64, tpu.core_type = #tpu.core_type<tc>, window_params = [{transform_indices = @transform_0, window_bounds = array<i64: 32, 32>}, {pipeline_mode = #tpu.pipeline_mode<synchronous>, transform_indices = @transform_1, window_bounds = array<i64: 1, 32>}, {transform_indices = @transform_2, window_bounds = array<i64: 32, 128>}, {transform_indices = @transform_3, window_bounds = array<i64: 1, 128>}, {transform_indices = @transform_4, window_bounds = array<i64: 32, 128>}]} {
    %c0_i32 = arith.constant 0 : i32
    %0 = arith.cmpi eq, %arg1, %c0_i32 : i32
    %1 = arith.extui %0 : i1 to i32
    %c0_i32_0 = arith.constant 0 : i32
    %2 = arith.cmpi ne, %1, %c0_i32_0 : i32
    scf.if %2 {
      %c0_8 = arith.constant 0 : index
      %c0_9 = arith.constant 0 : index
      %10 = vector.load %arg2[%c0_8, %c0_9] : memref<32x32xf32, #tpu.memory_space<vmem>>, vector<32x32xf32>
      %cst_10 = arith.constant dense<0.000000e+00> : vector<32xf32>
      %11 = vector.multi_reduction <add>, %10, %cst_10 [1] : vector<32x32xf32> to vector<32xf32>
      %12 = vector.shape_cast %11 : vector<32xf32> to vector<32x1xf32>
      %cst_11 = arith.constant 3.200000e+01 : f32
      %13 = vector.broadcast %cst_11 : f32 to vector<32x1xf32>
      %14 = arith.divf %12, %13 : vector<32x1xf32>
      %15 = vector.broadcast %14 : vector<32x1xf32> to vector<32x32xf32>
      %16 = arith.subf %10, %15 : vector<32x32xf32>
      %17 = arith.mulf %16, %16 : vector<32x32xf32>
      %cst_12 = arith.constant dense<0.000000e+00> : vector<32xf32>
      %18 = vector.multi_reduction <add>, %17, %cst_12 [1] : vector<32x32xf32> to vector<32xf32>
      %19 = vector.shape_cast %18 : vector<32xf32> to vector<32x1xf32>
      %cst_13 = arith.constant 3.200000e+01 : f32
      %20 = vector.broadcast %cst_13 : f32 to vector<32x1xf32>
      %21 = arith.divf %19, %20 : vector<32x1xf32>
      %cst_14 = arith.constant 9.99999974E-6 : f32
      %22 = vector.broadcast %cst_14 : f32 to vector<32x1xf32>
      %23 = arith.addf %21, %22 : vector<32x1xf32>
      %24 = math.rsqrt %23 : vector<32x1xf32>
      %25 = vector.broadcast %24 : vector<32x1xf32> to vector<32x32xf32>
      %26 = arith.mulf %16, %25 : vector<32x32xf32>
      %c0_15 = arith.constant 0 : index
      %c0_16 = arith.constant 0 : index
      %27 = vector.load %arg3[%c0_15, %c0_16] : memref<1x32xf32, #tpu.memory_space<vmem>>, vector<1x32xf32>
      %28 = vector.broadcast %27 : vector<1x32xf32> to vector<32x32xf32>
      %29 = arith.mulf %26, %28 : vector<32x32xf32>
      %c0_17 = arith.constant 0 : index
      %c0_18 = arith.constant 0 : index
      %30 = vector.load %arg7[%c0_17, %c0_18] : memref<32x32xf32, #tpu.memory_space<vmem>>, vector<32x32xf32>
      tpu.vector_store %arg7[%c0_17, %c0_18], %29 {strides = array<i32>} : memref<32x32xf32, #tpu.memory_space<vmem>>, vector<32x32xf32>,
    } else {
    }
    %c0 = arith.constant 0 : index
    %c0_1 = arith.constant 0 : index
    %3 = vector.load %arg7[%c0, %c0_1] : memref<32x32xf32, #tpu.memory_space<vmem>>, vector<32x32xf32>
    %c0_2 = arith.constant 0 : index
    %c0_3 = arith.constant 0 : index
    %4 = vector.load %arg4[%c0_2, %c0_3] : memref<32x128xf32, #tpu.memory_space<vmem>>, vector<32x128xf32>
    %cst = arith.constant dense<0.000000e+00> : vector<32x128xf32>
    %5 = tpu.matmul %3, %4, %cst {dimension_numbers = #tpu.dot_dimension_numbers<[1], [0], [0], [1], [0, 0, 1, 1], [], []>} : vector<32x32xf32>, vector<32x128xf32>, vector<32x128xf32> -> vector<32x128xf32>
    %c0_4 = arith.constant 0 : index
    %c0_5 = arith.constant 0 : index
    %6 = vector.load %arg5[%c0_4, %c0_5] : memref<1x128xf32, #tpu.memory_space<vmem>>, vector<1x128xf32>
    %7 = vector.broadcast %6 : vector<1x128xf32> to vector<32x128xf32>
    %8 = arith.addf %5, %7 : vector<32x128xf32>
    %c0_6 = arith.constant 0 : index
    %c0_7 = arith.constant 0 : index
    %9 = vector.load %arg6[%c0_6, %c0_7] : memref<32x128xf32, #tpu.memory_space<vmem>>, vector<32x128xf32>
    tpu.vector_store %arg6[%c0_6, %c0_7], %8 {strides = array<i32>} : memref<32x128xf32, #tpu.memory_space<vmem>>, vector<32x128xf32>,
    return
  }
  func.func @transform_0(%arg0: i32, %arg1: i32) -> (i32, i32) {
    %c0_i32 = arith.constant 0 : i32
    %c0_i32_0 = arith.constant 0 : i32
    return %arg0, %c0_i32 : i32, i32
  }
  func.func @transform_1(%arg0: i32, %arg1: i32) -> (i32, i32) {
    %c0_i32 = arith.constant 0 : i32
    %c0_i32_0 = arith.constant 0 : i32
    %c0_i32_1 = arith.constant 0 : i32
    return %c0_i32, %c0_i32_0 : i32, i32
  }
  func.func @transform_2(%arg0: i32, %arg1: i32) -> (i32, i32) {
    %c0_i32 = arith.constant 0 : i32
    %c0_i32_0 = arith.constant 0 : i32
    return %c0_i32, %arg1 : i32, i32
  }
  func.func @transform_3(%arg0: i32, %arg1: i32) -> (i32, i32) {
    %c0_i32 = arith.constant 0 : i32
    %c0_i32_0 = arith.constant 0 : i32
    return %c0_i32, %arg1 : i32, i32
  }
  func.func @transform_4(%arg0: i32, %arg1: i32) -> (i32, i32) {
    %c0_i32 = arith.constant 0 : i32
    return %arg0, %arg1 : i32, i32
  }
}

</mosaic_0001>

<llo_original>
// kernel: tpu_custom_call.1
$region0: #{tpu_custom_call.1}
  #allocation0 [shape = 'u32[]', space=smem, size = 0x4, offset = 0x4, fixed_abs, tag = 'smem constant byte address 0x4 - core index']
  #allocation1 [shape = 'u32[72,128]{1,0:T(1,128)}', space=vmem, size = 0x9000, scoped, tag = 'internal scratch']
  #allocation2 [shape = 'f32[32,32]{1,0:T(8,128)}', space=vmem, size = 0x4000, scoped, tag = 'scratch operand']
  %s0 = inlined_call_operand.hbm [shape: f32[32,32], index: 0, kind: input, shape index: {}]
  %s1 = inlined_call_operand.hbm [shape: f32[1,32], index: 1, kind: input, shape index: {}]
  %s2 = inlined_call_operand.hbm [shape: f32[32,128], index: 2, kind: input, shape index: {}]
  %s3 = inlined_call_operand.vmem [shape: f32[1,128], index: 3, kind: input, shape index: {}]
  %s4 = inlined_call_operand.hbm [shape: f32[32,128], index: 4, kind: output, shape index: {}]
  %s5 = sld [smem:[#allocation0]]
  $region42: #{tpu_custom_call.1} parent=0
    _
  %s7 = ssub.s32 1, %s5
  %s8 = scalar_select 0, %s7, %s5
  $region1: #{tpu_custom_call.1} parent=0
    #allocation3 [shape = 'u8[16384]{0}', space=vmem, size = 0x4000, scoped, tag = 'input window, operand 0, single buffered']
    #allocation4 [shape = 's32[1]{0}', space=sflag, size = 0x4, scoped, tag = 'scoped memory for tpu_custom_call.1']
    #allocation5 [shape = 's32[1]{0}', space=sflag, size = 0x4, scoped, tag = 'scoped memory for tpu_custom_call.1']
    #allocation6 [shape = 'u8[512]{0}', space=vmem, size = 0x400, scoped, tag = 'input window, operand 1, single buffered']
    #allocation7 [shape = 's32[1]{0}', space=sflag, size = 0x4, scoped, tag = 'scoped memory for tpu_custom_call.1']
    #allocation8 [shape = 'u8[16384]{0}', space=vmem, size = 0x4000, scoped, tag = 'input window, operand 2, single buffered']
    #allocation9 [shape = 'u8[16384]{0}', space=vmem, size = 0x4000, scoped, tag = 'output window, operand 0, single buffered']
    %9 = vsyncpa [#allocation4], 0
    %10 = vsyncpa [#allocation7], 0
    %11 = vsyncpa [#allocation5], 0
    // Predicated region
    $region2: #{tpu_custom_call.1} parent=1 // pred_check
      _
    $region3: #{tpu_custom_call.1} parent=1 // pred_check_branch
      %13 = sbr.rel (0) target = $region5
    $region4: #{tpu_custom_call.1} parent=1 // pred_region
      %15 = vsyncadd [#allocation4], 0
      %s16 = sshll.u32 %s0, 4
      %s17 = int_to_ptr.hbm [resolvable:$true] %s16
      %s18 = sshll.u32 [#allocation3], 4
      %s19 = int_to_ptr.vmem [resolvable:$true] %s18
      %24 = dma.hbm_to_vmem [thread:$0]  %s17, 512, %s19, [#allocation4], 128, 128, 8
    $region5: #{tpu_custom_call.1} parent=1 // pred_fallthru
      _
    // Predicated region
    $region6: #{tpu_custom_call.1} parent=1 // pred_check
      _
    $region7: #{tpu_custom_call.1} parent=1 // pred_check_branch
      %26 = sbr.rel (0) target = $region9
    $region8: #{tpu_custom_call.1} parent=1 // pred_region
      %28 = vsyncadd [#allocation7], 0
      %s30 = sshll.u32 %s1, 4
      %s31 = int_to_ptr.hbm [resolvable:$true] %s30
      %s32 = sshll.u32 [#allocation6], 4
      %s33 = int_to_ptr.vmem [resolvable:$true] %s32
      %35 = dma.hbm_to_vmem [thread:$0]  %s31, 16, %s33, [#allocation7]
    $region9: #{tpu_custom_call.1} parent=1 // pred_fallthru
      _
    // Predicated region
    $region10: #{tpu_custom_call.1} parent=1 // pred_check
      _
    $region11: #{tpu_custom_call.1} parent=1 // pred_check_branch
      %37 = sbr.rel (0) target = $region13
    $region12: #{tpu_custom_call.1} parent=1 // pred_region
      %39 = vsyncadd [#allocation7], 0
      %s40 = sshll.u32 %s2, 4
      %s41 = int_to_ptr.hbm [resolvable:$true] %s40
      %s42 = sshll.u32 [#allocation8], 4
      %s43 = int_to_ptr.vmem [resolvable:$true] %s42
      %48 = dma.hbm_to_vmem [thread:$0]  %s41, 512, %s43, [#allocation7], 128, 128, 8
    $region13: #{tpu_custom_call.1} parent=1 // pred_fallthru
      _
    // Predicated region
    $region14: #{tpu_custom_call.1} parent=1 // pred_check
      _
    $region15: #{tpu_custom_call.1} parent=1 // pred_check_branch
      %50 = sbr.rel (0) target = $region17
    $region16: #{tpu_custom_call.1} parent=1 // pred_region
      _
    $region17: #{tpu_custom_call.1} parent=1 // pred_fallthru
      _
    // Predicated region
    $region18: #{tpu_custom_call.1} parent=1 // pred_check
      _
    $region19: #{tpu_custom_call.1} parent=1 // pred_check_branch
      %52 = sbr.rel (0) target = $region21
    $region20: #{tpu_custom_call.1} parent=1 // pred_region
      %54 = dma.done [#allocation4], 512
    $region21: #{tpu_custom_call.1} parent=1 // pred_fallthru
      _
    // Predicated region
    $region22: #{tpu_custom_call.1} parent=1 // pred_check
      _
    $region23: #{tpu_custom_call.1} parent=1 // pred_check_branch
      %56 = sbr.rel (0) target = $region25
    $region24: #{tpu_custom_call.1} parent=1 // pred_region
      %58 = dma.done [#allocation7], 16
    $region25: #{tpu_custom_call.1} parent=1 // pred_fallthru
      _
    // Predicated region
    $region26: #{tpu_custom_call.1} parent=1 // pred_check
      _
    $region27: #{tpu_custom_call.1} parent=1 // pred_check_branch
      %60 = sbr.rel (0) target = $region29
    $region28: #{tpu_custom_call.1} parent=1 // pred_region
      %62 = dma.done [#allocation7], 512
    $region29: #{tpu_custom_call.1} parent=1 // pred_fallthru
      _
    %p63 = scmp.eq.s32.totalorder 0, 0
    // Predicated region
    $region30: #{tpu_custom_call.1} parent=1 // pred_check
      %p64 = pneg %p63
    $region31: #{tpu_custom_call.1} parent=1 // pred_check_branch
      %66 = sbr.rel (%p64) target = $region33
    $region32: #{tpu_custom_call.1} parent=1 // pred_region
      %v67 = vld [vmem:[#allocation3] sm:$0xff]
      %v68 = vld [vmem:[#allocation3 + $0x8] sm:$0xff]
      %v69 = vld [vmem:[#allocation3 + $0x10] sm:$0xff]
      %v70 = vld [vmem:[#allocation3 + $0x18] sm:$0xff]
      %vm71 = vcmask 261120
      %v72 = vsel %vm71, %v67, 0.0
      %73 = vadd.xlane.f32.xlu0 %v72
      %v74 = vpop.xlane.xlu0 %73
      %v75 = vsel %vm71, %v68, 0.0
      %76 = vadd.xlane.f32.xlu0 %v75
      %v77 = vpop.xlane.xlu0 %76
      %v78 = vsel %vm71, %v69, 0.0
      %79 = vadd.xlane.f32.xlu0 %v78
      %v80 = vpop.xlane.xlu0 %79
      %v81 = vsel %vm71, %v70, 0.0
      %82 = vadd.xlane.f32.xlu0 %v81
      %v83 = vpop.xlane.xlu0 %82
      %v84 = vrcp.pop 32.0
      %v85 = vmul.f32 32.0, %v84
      %v86 = vsub.f32 1.0, %v85
      %v87 = vmul.f32 %v84, %v86
      %v88 = vadd.f32 %v84, %v87
      %vm89 = vweird.f32 %v84
      %v90 = vsel %vm89, %v84, %v88
      %v91 = vmul.f32 %v74, %v90
      %v92 = vmul.f32 %v77, %v90
      %v93 = vmul.f32 %v80, %v90
      %v94 = vmul.f32 %v83, %v90
      %v95 = vsub.f32 %v67, %v91
      %v96 = vsub.f32 %v68, %v92
      %v97 = vsub.f32 %v69, %v93
      %v98 = vsub.f32 %v70, %v94
      %v99 = vmul.f32 %v95, %v95
      %v100 = vmul.f32 %v96, %v96
      %v101 = vmul.f32 %v97, %v97
      %v102 = vmul.f32 %v98, %v98
      %v103 = vsel %vm71, %v99, 0.0
      %104 = vadd.xlane.f32.xlu0 %v103
      %v105 = vpop.xlane.xlu0 %104
      %v106 = vsel %vm71, %v100, 0.0
      %107 = vadd.xlane.f32.xlu0 %v106
      %v108 = vpop.xlane.xlu0 %107
      %v109 = vsel %vm71, %v101, 0.0
      %110 = vadd.xlane.f32.xlu0 %v109
      %v111 = vpop.xlane.xlu0 %110
      %v112 = vsel %vm71, %v102, 0.0
      %113 = vadd.xlane.f32.xlu0 %v112
      %v114 = vpop.xlane.xlu0 %113
      %v115 = vmul.f32 %v105, %v90
      %v116 = vmul.f32 %v108, %v90
      %v117 = vmul.f32 %v111, %v90
      %v118 = vmul.f32 %v114, %v90
      %v119 = vadd.f32 %v115, 1e-05
      %v120 = vadd.f32 %v116, 1e-05
      %v121 = vadd.f32 %v117, 1e-05
      %v122 = vadd.f32 %v118, 1e-05
      %v123 = vrsqrt.pop %v119
      %v124 = vmul.f32 %v123, %v119
      %v125 = vmul.f32 %v124, %v123
      %v126 = vmul.f32 0.5, %v125
      %v127 = vsub.f32 1.5, %v126
      %v128 = vmul.f32 %v123, %v127
      %vm129 = vweird.f32 %v119
      %vm130 = vweird.f32 %v123
      %vm131 = vmor %vm129, %vm130
      %v132 = vsel %vm131, %v123, %v128
      %v133 = vrsqrt.pop %v120
      %v134 = vmul.f32 %v133, %v120
      %v135 = vmul.f32 %v134, %v133
      %v136 = vmul.f32 0.5, %v135
      %v137 = vsub.f32 1.5, %v136
      %v138 = vmul.f32 %v133, %v137
      %vm139 = vweird.f32 %v120
      %vm140 = vweird.f32 %v133
      %vm141 = vmor %vm139, %vm140
      %v142 = vsel %vm141, %v133, %v138
      %v143 = vrsqrt.pop %v121
      %v144 = vmul.f32 %v143, %v121
      %v145 = vmul.f32 %v144, %v143
      %v146 = vmul.f32 0.5, %v145
      %v147 = vsub.f32 1.5, %v146
      %v148 = vmul.f32 %v143, %v147
      %vm149 = vweird.f32 %v121
      %vm150 = vweird.f32 %v143
      %vm151 = vmor %vm149, %vm150
      %v152 = vsel %vm151, %v143, %v148
      %v153 = vrsqrt.pop %v122
      %v154 = vmul.f32 %v153, %v122
      %v155 = vmul.f32 %v154, %v153
      %v156 = vmul.f32 0.5, %v155
      %v157 = vsub.f32 1.5, %v156
      %v158 = vmul.f32 %v153, %v157
      %vm159 = vweird.f32 %v122
      %vm160 = vweird.f32 %v153
      %vm161 = vmor %vm159, %vm160
      %v162 = vsel %vm161, %v153, %v158
      %v163 = vmul.f32 %v95, %v132
      %v164 = vmul.f32 %v96, %v142
      %v165 = vmul.f32 %v97, %v152
      %v166 = vmul.f32 %v98, %v162
      %v167 = vld [vmem:[#allocation6] sm:$0x1]
      %v169 = vperm.slane %v167, 0
      %v171 = vmul.f32 %v163, %v169
      %v172 = vmul.f32 %v164, %v169
      %v173 = vmul.f32 %v165, %v169
      %v174 = vmul.f32 %v166, %v169
      %175 = vst.msk [vmem:[#allocation2] sm:$0xff] %vm71, %v171
      %176 = vst.msk [vmem:[#allocation2 + $0x8] sm:$0xff] %vm71, %v172
      %177 = vst.msk [vmem:[#allocation2 + $0x10] sm:$0xff] %vm71, %v173
      %178 = vst.msk [vmem:[#allocation2 + $0x18] sm:$0xff] %vm71, %v174
    $region33: #{tpu_custom_call.1} parent=1 // pred_fallthru
      _
    %v179 = vld [vmem:[#allocation2] sm:$0xff]
    %v180 = vld [vmem:[#allocation2 + $0x8] sm:$0xff]
    %v181 = vld [vmem:[#allocation2 + $0x10] sm:$0xff]
    %v182 = vld [vmem:[#allocation2 + $0x18] sm:$0xff]
    %v183 = vld [vmem:[#allocation8] sm:$0xff]
    %v184 = vld [vmem:[#allocation8 + $0x8] sm:$0xff]
    %v185 = vld [vmem:[#allocation8 + $0x10] sm:$0xff]
    %v186 = vld [vmem:[#allocation8 + $0x18] sm:$0xff]
    %v187 = vld [vmem:[%s3] sm:$0x1]
    %v189 = vperm.slane %v187, 0
    %vm191 = vcmask 261120
    %v193 = vsel %vm191, %v179, 0
    %v196 = vsel %vm191, %v180, 0
    %v199 = vsel %vm191, %v181, 0
    %v202 = vsel %vm191, %v182, 0
    %204 = vmatpush.msra.mxu0 0.0
    %205 = vmatpush.msra.mxu0 0.0
    %206 = vmatpush.msra.mxu0 0.0
    %207 = vmatpush.msra.mxu0 0.0
    %208 = vmatpush.msra.mxu0 0.0
    %209 = vmatpush.msra.mxu0 0.0
    %210 = vmatpush.msra.mxu0 0.0
    %211 = vmatpush.msra.mxu0 0.0
    %212 = vmatpush.msra.mxu0 0.0
    %213 = vmatpush.msra.mxu0 0.0
    %214 = vmatpush.msra.mxu0 0.0
    %215 = vmatpush.msra.mxu0 0.0
    %216 = vmatpush.msra.mxu0 %v186
    %217 = vmatpush.msra.mxu0 %v185
    %218 = vmatpush.msra.mxu0 %v184
    %219 = vmatpush.msra.mxu0 %v183
    %220 = vmatmul.f32.gmra.mxu0 %v193
    %v221 = vpop.f32.mrf.mxu0
    %v222 = vadd.f32 %v189, %v221
    %223 = vmatmul.f32.gmra.mxu0 %v196
    %v224 = vpop.f32.mrf.mxu0
    %v225 = vadd.f32 %v189, %v224
    %226 = vmatmul.f32.gmra.mxu0 %v199
    %v227 = vpop.f32.mrf.mxu0
    %v228 = vadd.f32 %v189, %v227
    %229 = vmatmul.f32.gmra.mxu0 %v202
    %v230 = vpop.f32.mrf.mxu0
    %v231 = vadd.f32 %v189, %v230
    %232 = vdwg.mxu0
    %233 = vst [vmem:[#allocation9] sm:$0xff] %v222
    %234 = vst [vmem:[#allocation9 + $0x8] sm:$0xff] %v225
    %235 = vst [vmem:[#allocation9 + $0x10] sm:$0xff] %v228
    %236 = vst [vmem:[#allocation9 + $0x18] sm:$0xff] %v231
    // Predicated region
    $region34: #{tpu_custom_call.1} parent=1 // pred_check
      _
    $region35: #{tpu_custom_call.1} parent=1 // pred_check_branch
      %238 = sbr.rel (0) target = $region37
    $region36: #{tpu_custom_call.1} parent=1 // pred_region
      %240 = vsyncadd [#allocation5], 0
      %s241 = sshll.u32 [#allocation9], 4
      %s242 = int_to_ptr.vmem [resolvable:$true] %s241
      %s243 = sshll.u32 %s4, 4
      %s244 = int_to_ptr.hbm [resolvable:$true] %s243
      %249 = dma.vmem_to_hbm [thread:$0]  %s242, 512, %s244, [#allocation5], 128, 128, 8
    $region37: #{tpu_custom_call.1} parent=1 // pred_fallthru
      _
    // Predicated region
    $region38: #{tpu_custom_call.1} parent=1 // pred_check
      _
    $region39: #{tpu_custom_call.1} parent=1 // pred_check_branch
      %251 = sbr.rel (0) target = $region41
    $region40: #{tpu_custom_call.1} parent=1 // pred_region
      %253 = dma.done [#allocation5], 512
    $region41: #{tpu_custom_call.1} parent=1 // pred_fallthru
      _
    %254 = vsyncpa [#allocation4], 1
    %255 = vsyncpa [#allocation7], 1
    %256 = vsyncpa [#allocation5], 1

</llo_original>
